<compile_context>
chip_gen: v6e
topology: v6e:2x2x1
jax: 0.10.0
libtpu: 0.0.40
codegen_flags: <defaults>
</compile_context>

<pallas_src>
import functools

import jax
import jax.numpy as jnp
from jax.experimental import pallas as pl
from jax.experimental.pallas import tpu as pltpu


def _triplet_kernel(a_ref, p_ref, n_ref, o_ref, *, margin, euclidean):
    """One grid step: (block_b, D) tiles in, (block_b, 1) per-sample losses out."""
    a = a_ref[...].astype(jnp.float32)
    p = p_ref[...].astype(jnp.float32)
    n = n_ref[...].astype(jnp.float32)

    if euclidean:
        # dp - dn = sum((a-p)^2 - (a-n)^2, 1) = sum((p-n)*(p+n-2a), 1)
        diff = jnp.sum((p - n) * (p + n - 2.0 * a), axis=1, keepdims=True)  # (tb, 1)
    else:
        # F.cosine_similarity(x1, x2, dim=1, eps=1e-8):
        #   x1.x2 / max(||x1|| * ||x2||, eps)
        eps = jnp.float32(1e-8)
        dot_ap = jnp.sum(a * p, axis=1, keepdims=True)
        dot_an = jnp.sum(a * n, axis=1, keepdims=True)
        sq_a = jnp.sum(a * a, axis=1, keepdims=True)
        sq_p = jnp.sum(p * p, axis=1, keepdims=True)
        sq_n = jnp.sum(n * n, axis=1, keepdims=True)
        cos_ap = dot_ap / jnp.maximum(jnp.sqrt(sq_a * sq_p), eps)
        cos_an = dot_an / jnp.maximum(jnp.sqrt(sq_a * sq_n), eps)
        diff = cos_ap - cos_an

    o_ref[...] = jnp.maximum(diff + margin, 0.0)


def _choose_block_b(B, D, itemsize):
    """Pick a batch tile so each input tile is ~2 MiB (6 double-buffered input
    tiles fit comfortably in scoped VMEM on v5e/v6e/v7x)."""
    sub = {4: 8, 2: 16, 1: 32}.get(itemsize, 8)  # sublane alignment per dtype
    target_tile_bytes = 2 * 1024 * 1024
    bb = max(sub, (target_tile_bytes // max(D * itemsize, 1)) // sub * sub)
    b_ceil = -(-B // sub) * sub                  # batch rounded up to alignment
    return min(bb, b_ceil)


def triplet_loss(anchor, positive, negative, *, margin=1.0,
                 similarity_type="euclidean", block_b=None):
    """Triplet loss (scalar), matching the PyTorch module's forward."""
    assert anchor.shape == positive.shape == negative.shape
    assert anchor.ndim == 2
    B, D = anchor.shape
    itemsize = jnp.dtype(anchor.dtype).itemsize
    if block_b is None:
        block_b = _choose_block_b(B, D, itemsize)

    # Pad the batch up to a tile multiple; padded rows are sliced off below,
    # so they never contribute to the mean.
    B_pad = -(-B // block_b) * block_b
    if B_pad != B:
        pad = ((0, B_pad - B), (0, 0))
        anchor = jnp.pad(anchor, pad)
        positive = jnp.pad(positive, pad)
        negative = jnp.pad(negative, pad)
    grid = B_pad // block_b

    tile_bytes = block_b * D * itemsize
    # 3 inputs x 2 pipeline buffers + (tiny) output buffers + headroom.
    vmem_limit = int(min(6 * tile_bytes + 4 * block_b * 4 + (4 << 20), 48 << 20))

    kernel = functools.partial(
        _triplet_kernel,
        margin=float(margin),
        euclidean=(similarity_type == "euclidean"),
    )
    in_spec = pl.BlockSpec((block_b, D), lambda i: (i, 0))

    losses = pl.pallas_call(
        kernel,
        out_shape=jax.ShapeDtypeStruct((B_pad, 1), jnp.float32),
        grid_spec=pltpu.PrefetchScalarGridSpec(
            num_scalar_prefetch=0,
            grid=(grid,),
            in_specs=[in_spec, in_spec, in_spec],
            out_specs=pl.BlockSpec((block_b, 1), lambda i: (i, 0)),
        ),
        compiler_params=pltpu.CompilerParams(
            dimension_semantics=("parallel",),   # independent tiles (v7x: 2 TCs)
            vmem_limit_bytes=vmem_limit,
        ),
    )(anchor, positive, negative)

    return jnp.mean(losses[:B, 0])


def _reference_euclidean(anchor, positive, negative, margin=1.0):
    dp = jnp.sum((anchor - positive) ** 2, axis=1)
    dn = jnp.sum((anchor - negative) ** 2, axis=1)
    return jnp.mean(jnp.maximum(dp - dn + margin, 0.0))


def _reference_cosine(anchor, positive, negative, margin=1.0, eps=1e-8):
    def cos(x1, x2):
        num = jnp.sum(x1 * x2, axis=1)
        den = jnp.maximum(
            jnp.linalg.norm(x1, axis=1) * jnp.linalg.norm(x2, axis=1), eps)
        return num / den
    return jnp.mean(jnp.maximum(cos(anchor, positive) - cos(anchor, negative)
                                + margin, 0.0))


if __name__ == "__main__":
    key = jax.random.PRNGKey(0)
    k1, k2, k3, k4, k5, k6 = jax.random.split(key, 6)

    # Case 1: small shape consistent with the module's forward (B=16, D=32),
    # default euclidean branch.
    B, D = 16, 32
    anchor = jax.random.normal(k1, (B, D), dtype=jnp.float32)
    positive = jax.random.normal(k2, (B, D), dtype=jnp.float32)
    negative = jax.random.normal(k3, (B, D), dtype=jnp.float32)

    loss = jax.block_until_ready(triplet_loss(anchor, positive, negative, margin=1.0))
    ref = _reference_euclidean(anchor, positive, negative, margin=1.0)
    assert jnp.allclose(loss, ref, rtol=1e-5, atol=1e-5), (loss, ref)

    # Case 2: multi-tile + batch-padding path (B not a multiple of the forced
    # tile); still a small problem.
    B2, D2 = 20, 32
    a2 = jax.random.normal(k4, (B2, D2), dtype=jnp.float32)
    p2 = jax.random.normal(k5, (B2, D2), dtype=jnp.float32)
    n2 = jax.random.normal(k6, (B2, D2), dtype=jnp.float32)
    loss2 = jax.block_until_ready(triplet_loss(a2, p2, n2, margin=1.0, block_b=8))
    ref2 = _reference_euclidean(a2, p2, n2, margin=1.0)
    assert jnp.allclose(loss2, ref2, rtol=1e-5, atol=1e-5), (loss2, ref2)

    # Case 3: cosine-similarity branch of the module.
    loss3 = jax.block_until_ready(
        triplet_loss(anchor, positive, negative, margin=1.0,
                     similarity_type="cosine"))
    ref3 = _reference_cosine(anchor, positive, negative, margin=1.0)
    assert jnp.allclose(loss3, ref3, rtol=1e-5, atol=1e-5), (loss3, ref3)

    print("KERNEL_OK")
</pallas_src>

<mosaic_0001>
module attributes {stable_mosaic.version = 11 : i64} {
  func.func @_triplet_kernel(%arg0: i32, %arg1: memref<16x32xf32, #tpu.memory_space<vmem>>, %arg2: memref<16x32xf32, #tpu.memory_space<vmem>>, %arg3: memref<16x32xf32, #tpu.memory_space<vmem>>, %arg4: memref<16x1xf32, #tpu.memory_space<vmem>>) attributes {dimension_semantics = [#tpu.dimension_semantics<parallel>], iteration_bounds = array<i64: 1>, scalar_prefetch = 0 : i64, scratch_operands = 0 : i64, tpu.core_type = #tpu.core_type<tc>, window_params = [{transform_indices = @transform_0, window_bounds = array<i64: 16, 32>}, {transform_indices = @transform_1, window_bounds = array<i64: 16, 32>}, {transform_indices = @transform_2, window_bounds = array<i64: 16, 32>}, {transform_indices = @transform_3, window_bounds = array<i64: 16, 1>}]} {
    %c0 = arith.constant 0 : index
    %c0_0 = arith.constant 0 : index
    %0 = vector.load %arg1[%c0, %c0_0] : memref<16x32xf32, #tpu.memory_space<vmem>>, vector<16x32xf32>
    %c0_1 = arith.constant 0 : index
    %c0_2 = arith.constant 0 : index
    %1 = vector.load %arg2[%c0_1, %c0_2] : memref<16x32xf32, #tpu.memory_space<vmem>>, vector<16x32xf32>
    %c0_3 = arith.constant 0 : index
    %c0_4 = arith.constant 0 : index
    %2 = vector.load %arg3[%c0_3, %c0_4] : memref<16x32xf32, #tpu.memory_space<vmem>>, vector<16x32xf32>
    %3 = arith.subf %1, %2 : vector<16x32xf32>
    %4 = arith.addf %1, %2 : vector<16x32xf32>
    %cst = arith.constant 2.000000e+00 : f32
    %5 = vector.broadcast %cst : f32 to vector<16x32xf32>
    %6 = arith.mulf %5, %0 : vector<16x32xf32>
    %7 = arith.subf %4, %6 : vector<16x32xf32>
    %8 = arith.mulf %3, %7 : vector<16x32xf32>
    %cst_5 = arith.constant dense<0.000000e+00> : vector<16xf32>
    %9 = vector.multi_reduction <add>, %8, %cst_5 [1] : vector<16x32xf32> to vector<16xf32>
    %10 = vector.shape_cast %9 : vector<16xf32> to vector<16x1xf32>
    %cst_6 = arith.constant 1.000000e+00 : f32
    %11 = vector.broadcast %cst_6 : f32 to vector<16x1xf32>
    %12 = arith.addf %10, %11 : vector<16x1xf32>
    %cst_7 = arith.constant 0.000000e+00 : f32
    %13 = vector.broadcast %cst_7 : f32 to vector<16x1xf32>
    %14 = arith.maximumf %12, %13 : vector<16x1xf32>
    %c0_8 = arith.constant 0 : index
    %c0_9 = arith.constant 0 : index
    %15 = vector.load %arg4[%c0_8, %c0_9] : memref<16x1xf32, #tpu.memory_space<vmem>>, vector<16x1xf32>
    tpu.vector_store %arg4[%c0_8, %c0_9], %14 {strides = array<i32>} : memref<16x1xf32, #tpu.memory_space<vmem>>, vector<16x1xf32>,
    return
  }
  func.func @transform_0(%arg0: i32) -> (i32, i32) {
    %c0_i32 = arith.constant 0 : i32
    %c0_i32_0 = arith.constant 0 : i32
    return %arg0, %c0_i32 : i32, i32
  }
  func.func @transform_1(%arg0: i32) -> (i32, i32) {
    %c0_i32 = arith.constant 0 : i32
    %c0_i32_0 = arith.constant 0 : i32
    return %arg0, %c0_i32 : i32, i32
  }
  func.func @transform_2(%arg0: i32) -> (i32, i32) {
    %c0_i32 = arith.constant 0 : i32
    %c0_i32_0 = arith.constant 0 : i32
    return %arg0, %c0_i32 : i32, i32
  }
  func.func @transform_3(%arg0: i32) -> (i32, i32) {
    %c0_i32 = arith.constant 0 : i32
    %c0_i32_0 = arith.constant 0 : i32
    return %arg0, %c0_i32 : i32, i32
  }
}

</mosaic_0001>

<llo_original>
// kernel: tpu_custom_call.1
$region0: #{tpu_custom_call.1}
  #allocation0 [shape = 'u32[]', space=smem, size = 0x4, offset = 0x4, fixed_abs, tag = 'smem constant byte address 0x4 - core index']
  #allocation1 [shape = 'u32[144,128]{1,0:T(1,128)}', space=vmem, size = 0x12000, scoped, tag = 'internal scratch']
  %s0 = inlined_call_operand.hbm [shape: f32[16,32], index: 0, kind: input, shape index: {}]
  %s1 = inlined_call_operand.hbm [shape: f32[16,32], index: 1, kind: input, shape index: {}]
  %s2 = inlined_call_operand.hbm [shape: f32[16,32], index: 2, kind: input, shape index: {}]
  %s3 = inlined_call_operand.vmem [shape: f32[16,1], index: 3, kind: output, shape index: {}]
  %s4 = sld [smem:[#allocation0]]
  $region34: #{tpu_custom_call.1} parent=0
    _
  %s6 = ssub.s32 1, %s4
  %s7 = scalar_select 0, %s6, %s4
  $region1: #{tpu_custom_call.1} parent=0
    #allocation2 [shape = 'u8[8192]{0}', space=vmem, size = 0x2000, scoped, tag = 'input window, operand 0, single buffered']
    #allocation3 [shape = 's32[1]{0}', space=sflag, size = 0x4, scoped, tag = 'scoped memory for tpu_custom_call.1']
    #allocation4 [shape = 'u8[8192]{0}', space=vmem, size = 0x2000, scoped, tag = 'input window, operand 1, single buffered']
    #allocation5 [shape = 's32[1]{0}', space=sflag, size = 0x4, scoped, tag = 'scoped memory for tpu_custom_call.1']
    #allocation6 [shape = 'u8[8192]{0}', space=vmem, size = 0x2000, scoped, tag = 'input window, operand 2, single buffered']
    %8 = vsyncpa [#allocation3], 0
    %9 = vsyncpa [#allocation5], 0
    // Predicated region
    $region2: #{tpu_custom_call.1} parent=1 // pred_check
      _
    $region3: #{tpu_custom_call.1} parent=1 // pred_check_branch
      %11 = sbr.rel (0) target = $region5
    $region4: #{tpu_custom_call.1} parent=1 // pred_region
      %s13 = ssub.s32 256, 256
      %14 = vsyncadd [#allocation3], %s13
      %s15 = sshll.u32 [#allocation2], 4
      %s16 = int_to_ptr.vmem [resolvable:$true] %s15
      %21 = dma.hbm_to_vmem [thread:$0]  %s0, 256, %s16, [#allocation3], 128, 128, 8
    $region5: #{tpu_custom_call.1} parent=1 // pred_fallthru
      _
    // Predicated region
    $region6: #{tpu_custom_call.1} parent=1 // pred_check
      _
    $region7: #{tpu_custom_call.1} parent=1 // pred_check_branch
      %23 = sbr.rel (0) target = $region9
    $region8: #{tpu_custom_call.1} parent=1 // pred_region
      %s25 = ssub.s32 256, 256
      %26 = vsyncadd [#allocation5], %s25
      %s27 = sshll.u32 [#allocation4], 4
      %s28 = int_to_ptr.vmem [resolvable:$true] %s27
      %33 = dma.hbm_to_vmem [thread:$0]  %s1, 256, %s28, [#allocation5], 128, 128, 8
    $region9: #{tpu_custom_call.1} parent=1 // pred_fallthru
      _
    // Predicated region
    $region10: #{tpu_custom_call.1} parent=1 // pred_check
      _
    $region11: #{tpu_custom_call.1} parent=1 // pred_check_branch
      %35 = sbr.rel (0) target = $region13
    $region12: #{tpu_custom_call.1} parent=1 // pred_region
      %s37 = ssub.s32 256, 256
      %38 = vsyncadd [#allocation5], %s37
      %s39 = sshll.u32 [#allocation6], 4
      %s40 = int_to_ptr.vmem [resolvable:$true] %s39
      %45 = dma.hbm_to_vmem [thread:$0]  %s2, 256, %s40, [#allocation5], 128, 128, 8
    $region13: #{tpu_custom_call.1} parent=1 // pred_fallthru
      _
    // Predicated region
    $region14: #{tpu_custom_call.1} parent=1 // pred_check
      _
    $region15: #{tpu_custom_call.1} parent=1 // pred_check_branch
      %47 = sbr.rel (0) target = $region17
    $region16: #{tpu_custom_call.1} parent=1 // pred_region
      %48 = dma.done [#allocation3], 256
    $region17: #{tpu_custom_call.1} parent=1 // pred_fallthru
      _
    // Predicated region
    $region18: #{tpu_custom_call.1} parent=1 // pred_check
      _
    $region19: #{tpu_custom_call.1} parent=1 // pred_check_branch
      %50 = sbr.rel (0) target = $region21
    $region20: #{tpu_custom_call.1} parent=1 // pred_region
      %51 = dma.done [#allocation5], 256
    $region21: #{tpu_custom_call.1} parent=1 // pred_fallthru
      _
    // Predicated region
    $region22: #{tpu_custom_call.1} parent=1 // pred_check
      _
    $region23: #{tpu_custom_call.1} parent=1 // pred_check_branch
      %53 = sbr.rel (0) target = $region25
    $region24: #{tpu_custom_call.1} parent=1 // pred_region
      %54 = dma.done [#allocation5], 256
    $region25: #{tpu_custom_call.1} parent=1 // pred_fallthru
      _
    %v55 = vld [vmem:[#allocation2] sm:$0xff]
    %v56 = vld [vmem:[#allocation2 + $0x8] sm:$0xff]
    %v57 = vld [vmem:[#allocation4] sm:$0xff]
    %v58 = vld [vmem:[#allocation4 + $0x8] sm:$0xff]
    %v59 = vld [vmem:[#allocation6] sm:$0xff]
    %v60 = vld [vmem:[#allocation6 + $0x8] sm:$0xff]
    %v61 = vsub.f32 %v57, %v59
    %v62 = vsub.f32 %v58, %v60
    %v63 = vadd.f32 %v57, %v59
    %v64 = vadd.f32 %v58, %v60
    %v65 = vmul.f32 %v55, 2.0
    %v66 = vmul.f32 %v56, 2.0
    %v67 = vsub.f32 %v63, %v65
    %v68 = vsub.f32 %v64, %v66
    %v69 = vmul.f32 %v61, %v67
    %v70 = vmul.f32 %v62, %v68
    %vm71 = vcmask 261120
    %v72 = vsel %vm71, %v69, 0.0
    %73 = vadd.xlane.f32.xlu0 %v72
    %v74 = vpop.xlane.xlu0 %73
    %v75 = vsel %vm71, %v70, 0.0
    %76 = vadd.xlane.f32.xlu0 %v75
    %v77 = vpop.xlane.xlu0 %76
    %v78 = vadd.f32 %v74, 1.0
    %v79 = vadd.f32 %v77, 1.0
    %v80 = vmax.f32 %v78, 0.0
    %v81 = vmax.f32 %v79, 0.0
    %vm82 = vcmask 7168
    %83 = vst.msk [vmem:[%s3] sm:$0xff] %vm82, %v80
    %84 = vst.msk [vmem:[%s3 + $0x8] sm:$0xff] %vm82, %v81
    // Predicated region
    $region26: #{tpu_custom_call.1} parent=1 // pred_check
      _
    $region27: #{tpu_custom_call.1} parent=1 // pred_check_branch
      %86 = sbr.rel (0) target = $region29
    $region28: #{tpu_custom_call.1} parent=1 // pred_region
      _
    $region29: #{tpu_custom_call.1} parent=1 // pred_fallthru
      _
    // Predicated region
    $region30: #{tpu_custom_call.1} parent=1 // pred_check
      _
    $region31: #{tpu_custom_call.1} parent=1 // pred_check_branch
      %88 = sbr.rel (0) target = $region33
    $region32: #{tpu_custom_call.1} parent=1 // pred_region
      _
    $region33: #{tpu_custom_call.1} parent=1 // pred_fallthru
      _
    %89 = vsyncpa [#allocation3], 1
    %90 = vsyncpa [#allocation5], 1

</llo_original>
